<compile_context>
chip_gen: v7x
topology: tpu7x:2x2x1
jax: 0.10.0
libtpu: 0.0.40
codegen_flags: <defaults>
</compile_context>

<pallas_src>
import functools

import jax
import jax.numpy as jnp
from jax.experimental import pallas as pl
from jax.experimental.pallas import tpu as pltpu


# ----------------------------------------------------------------------------
# Kernel
# ----------------------------------------------------------------------------
def _autoencoder_kernel(num_layers, x_ref, *refs):
    """refs = (w0, b0, w1, b1, ..., w_{L-1}, b_{L-1}, out_ref).

    Lane-dense layout: x_ref / out_ref are (features, tile_m); weight i is
    bf16 (out_i, in_i) (PyTorch layout); bias i is f32 (out_i, 1).
    Layer i:  z = W_i @ h + b_i ;  ReLU for hidden layers, Sigmoid on last.
    """
    out_ref = refs[-1]
    params = refs[:-1]

    h = x_ref[...].astype(jnp.bfloat16)                      # (in_features, tile_m)
    for i in range(num_layers):
        w = params[2 * i][...]                               # bf16 (out_i, in_i)
        b = params[2 * i + 1][...]                           # f32  (out_i, 1)
        z = jnp.dot(w, h, preferred_element_type=jnp.float32) + b   # f32 (out_i, tile_m)
        if i < num_layers - 1:
            h = jnp.maximum(z, 0.0).astype(jnp.bfloat16)     # ReLU (VPU), back to bf16 for MXU
        else:
            h = jax.nn.sigmoid(z)                            # final Sigmoid (EUP), f32
    out_ref[...] = h.astype(out_ref.dtype)


# ----------------------------------------------------------------------------
# Hardware introspection (best-effort, safe fallbacks)
# ----------------------------------------------------------------------------
def _tpu_info():
    """Returns (vmem_capacity_bytes, chip_has_multiple_tensorcores)."""
    vmem_capacity = 128 << 20
    multicore = False
    try:
        vmem_capacity = int(pltpu.get_tpu_info().vmem_capacity_bytes)
    except Exception:
        pass
    try:
        kind = jax.devices()[0].device_kind.lower()
        multicore = ("v7" in kind) or ("7x" in kind)         # v7x: 2 TCs / chip
    except Exception:
        pass
    return vmem_capacity, multicore


# ----------------------------------------------------------------------------
# Tile-size selection (lane axis = batch, must be a multiple of 128 or == B)
# ----------------------------------------------------------------------------
def _auto_tile_m(B, in_features, max_width, vmem_budget_bytes, want_even_grid):
    # Per-batch-column VMEM cost: double-buffered f32 x + out tiles plus a few
    # live f32 activation slabs at the widest layer.
    per_col = in_features * 4 * 2 * 2 + 3 * max_width * 4
    cap = max(128, vmem_budget_bytes // per_col)
    if not want_even_grid and B <= cap:
        return B                                  # whole-batch tile -> grid=(1,)
    candidates = (16384, 8192, 4096, 2048, 1024, 512, 256, 128)
    if want_even_grid:
        for t in candidates:                      # even grid so both TCs get work
            if t <= cap and B % t == 0 and (B // t) % 2 == 0:
                return t
    for t in candidates:
        if t <= cap and B % t == 0:
            return t
    return B                                      # tiny / odd batch: single step


# ----------------------------------------------------------------------------
# One-time parameter prep (call ONCE, not per forward)
# ----------------------------------------------------------------------------
def prepare_params(weights, biases):
    """bf16 weights in PyTorch-native (out, in) layout, f32 (out, 1) biases."""
    w_bf16 = [jnp.asarray(w).astype(jnp.bfloat16) for w in weights]
    b_col = [jnp.asarray(b, dtype=jnp.float32).reshape(-1, 1) for b in biases]
    return w_bf16, b_col


# ----------------------------------------------------------------------------
# Forward wrapper
# ----------------------------------------------------------------------------
def autoencoder_forward(x, weights_bf16, biases_col, *, tile_m=None):
    """x: (B, in_features) f32.  weights_bf16[i]: bf16 (out_i, in_i).
    biases_col[i]: f32 (out_i, 1).  Returns (B, in_features) in x.dtype."""
    B, in_features = x.shape
    num_layers = len(weights_bf16)
    widths = [in_features] + [int(w.shape[0]) for w in weights_bf16]
    assert widths[-1] == in_features, "autoencoder must reconstruct in_features"

    vmem_capacity, multicore = _tpu_info()
    if tile_m is None:
        tile_m = _auto_tile_m(B, in_features, max(widths),
                              vmem_budget_bytes=vmem_capacity // 4,
                              want_even_grid=multicore and B >= 256)
    assert B % tile_m == 0, "batch must be a multiple of tile_m"
    grid_size = B // tile_m

    # Lane-dense layout: batch lives on the 128-wide lane axis.  The wrapper
    # transpose is a trivial XLA op (x is only B*in_features*4 bytes).
    x_t = x.T                                                 # (in_features, B), f32

    x_spec = pl.BlockSpec((in_features, tile_m), lambda i: (0, i))
    out_spec = pl.BlockSpec((in_features, tile_m), lambda i: (0, i))

    # Whole-array resident VMEM params (constant index -> one copy, no pipelining).
    param_specs, param_args = [], []
    for w, b in zip(weights_bf16, biases_col):
        param_specs += [pl.BlockSpec(memory_space=pltpu.MemorySpace.VMEM),
                        pl.BlockSpec(memory_space=pltpu.MemorySpace.VMEM)]
        param_args += [w, b]

    # VMEM footprint -> explicit limit (stays valid on v7x's 64 MiB VMEM).
    weight_bytes = sum(int(w.size) * 2 for w in weights_bf16) \
                 + sum(int(b.size) * 4 for b in biases_col)
    io_bytes = 2 * 2 * tile_m * in_features * 4               # double-buffered x + out (f32)
    act_bytes = 3 * tile_m * max(widths) * 4                  # live f32 activations
    footprint = weight_bytes + io_bytes + act_bytes
    vmem_limit = int(min(vmem_capacity * 3 // 4,
                         max(16 << 20, 2 * footprint + (4 << 20))))

    flops = 2 * B * sum(int(w.shape[0]) * int(w.shape[1]) for w in weights_bf16)
    cost = pl.CostEstimate(
        flops=flops,
        transcendentals=B * in_features,                      # final sigmoid
        bytes_accessed=2 * B * in_features * 4 + weight_bytes)

    kernel = functools.partial(_autoencoder_kernel, num_layers)

    def run(dim_sems):
        return pl.pallas_call(
            kernel,
            out_shape=jax.ShapeDtypeStruct((in_features, B), x.dtype),
            grid_spec=pltpu.PrefetchScalarGridSpec(
                num_scalar_prefetch=0,
                grid=(grid_size,),
                in_specs=[x_spec] + param_specs,
                out_specs=out_spec,
            ),
            compiler_params=pltpu.CompilerParams(
                dimension_semantics=dim_sems,
                vmem_limit_bytes=vmem_limit,
            ),
            cost_estimate=cost,
        )(x_t, *param_args)

    if multicore and grid_size >= 2 and grid_size % 2 == 0:
        # v7x: actually split grid steps across the 2 TensorCores.
        try:
            out_t = run((pltpu.CORE_PARALLEL,))
        except Exception:
            out_t = run(("parallel",))
    else:
        out_t = run(("parallel",) if grid_size > 1 else ("arbitrary",))

    return out_t.T                                            # back to (B, in_features)


# ----------------------------------------------------------------------------
# Deterministic parameter init (PyTorch nn.Linear layout: W is (out, in))
# ----------------------------------------------------------------------------
def init_params(key, in_features, hidden_sizes):
    layer_sizes = [in_features, *hidden_sizes, in_features]
    weights, biases = [], []
    for i in range(len(layer_sizes) - 1):
        fan_in, fan_out = layer_sizes[i], layer_sizes[i + 1]
        key, kw, kb = jax.random.split(key, 3)
        bound = 1.0 / jnp.sqrt(fan_in)
        w = jax.random.uniform(kw, (fan_out, fan_in), jnp.float32, -bound, bound)
        b = jax.random.uniform(kb, (fan_out,), jnp.float32, -bound, bound)
        weights.append(w)
        biases.append(b)
    return weights, biases


# Mirrors the kernel math exactly (bf16 MXU operands, f32 accumulate,
# f32 bias/ReLU/sigmoid, bf16 re-cast between layers).
def reference_forward_bf16(x, weights, biases):
    h = x.astype(jnp.bfloat16)
    n = len(weights)
    for i, (w, b) in enumerate(zip(weights, biases)):
        z = jnp.dot(h, w.astype(jnp.bfloat16).T,
                    preferred_element_type=jnp.float32) + b
        h = jnp.maximum(z, 0.0).astype(jnp.bfloat16) if i < n - 1 else jax.nn.sigmoid(z)
    return h


# Pure f32 reference (original nn.Module semantics) for a coarse sanity check.
# Note: the kernel uses bf16 MXU operands, so it matches this only to ~5e-2.
def reference_forward_f32(x, weights, biases):
    h = x
    n = len(weights)
    for i, (w, b) in enumerate(zip(weights, biases)):
        h = h @ w.T + b
        h = jnp.maximum(h, 0.0) if i < n - 1 else jax.nn.sigmoid(h)
    return h


# ----------------------------------------------------------------------------
# Main
# ----------------------------------------------------------------------------
if __name__ == "__main__":
    key = jax.random.PRNGKey(0)
    in_features = 32
    hidden_sizes = [64, 16, 64]
    batch = 512

    kx, kp = jax.random.split(key)
    x = jax.random.normal(kx, (batch, in_features), jnp.float32)
    weights, biases = init_params(kp, in_features, hidden_sizes)

    # One-time parameter prep (outside the per-call forward).
    w_bf16, b_col = prepare_params(weights, biases)

    out = autoencoder_forward(x, w_bf16, b_col)
    out = jax.block_until_ready(out)
    assert out.shape == (batch, in_features)

    ref_bf16 = reference_forward_bf16(x, weights, biases)
    ref_f32 = reference_forward_f32(x, weights, biases)
    assert jnp.allclose(out, ref_bf16, atol=2e-3, rtol=2e-3), "mismatch vs bf16 reference"
    assert jnp.allclose(out, ref_f32, atol=5e-2, rtol=0.0), "mismatch vs f32 reference"

    print("KERNEL_OK")
</pallas_src>

<mosaic_0001>
module attributes {stable_mosaic.version = 11 : i64} {
  func.func @_autoencoder_kernel(%arg0: i32, %arg1: memref<32x512xf32, #tpu.memory_space<vmem>>, %arg2: memref<64x32xbf16, #tpu.memory_space<vmem>>, %arg3: memref<64x1xf32, #tpu.memory_space<vmem>>, %arg4: memref<16x64xbf16, #tpu.memory_space<vmem>>, %arg5: memref<16x1xf32, #tpu.memory_space<vmem>>, %arg6: memref<64x16xbf16, #tpu.memory_space<vmem>>, %arg7: memref<64x1xf32, #tpu.memory_space<vmem>>, %arg8: memref<32x64xbf16, #tpu.memory_space<vmem>>, %arg9: memref<32x1xf32, #tpu.memory_space<vmem>>, %arg10: memref<32x512xf32, #tpu.memory_space<vmem>>) attributes {dimension_semantics = [#tpu.dimension_semantics<arbitrary>], iteration_bounds = array<i64: 1>, scalar_prefetch = 0 : i64, scratch_operands = 0 : i64, tpu.core_type = #tpu.core_type<tc>, window_params = [{transform_indices = @transform_0, window_bounds = array<i64: 32, 512>}, {pipeline_mode = #tpu.pipeline_mode<synchronous>, transform_indices = @transform_1, window_bounds = array<i64: 64, 32>}, {pipeline_mode = #tpu.pipeline_mode<synchronous>, transform_indices = @transform_2, window_bounds = array<i64: 64, 1>}, {pipeline_mode = #tpu.pipeline_mode<synchronous>, transform_indices = @transform_3, window_bounds = array<i64: 16, 64>}, {pipeline_mode = #tpu.pipeline_mode<synchronous>, transform_indices = @transform_4, window_bounds = array<i64: 16, 1>}, {pipeline_mode = #tpu.pipeline_mode<synchronous>, transform_indices = @transform_5, window_bounds = array<i64: 64, 16>}, {pipeline_mode = #tpu.pipeline_mode<synchronous>, transform_indices = @transform_6, window_bounds = array<i64: 64, 1>}, {pipeline_mode = #tpu.pipeline_mode<synchronous>, transform_indices = @transform_7, window_bounds = array<i64: 32, 64>}, {pipeline_mode = #tpu.pipeline_mode<synchronous>, transform_indices = @transform_8, window_bounds = array<i64: 32, 1>}, {transform_indices = @transform_9, window_bounds = array<i64: 32, 512>}]} {
    %c0 = arith.constant 0 : index
    %c0_0 = arith.constant 0 : index
    %0 = vector.load %arg1[%c0, %c0_0] : memref<32x512xf32, #tpu.memory_space<vmem>>, vector<32x512xf32>
    %1 = arith.truncf %0 : vector<32x512xf32> to vector<32x512xbf16>
    %c0_1 = arith.constant 0 : index
    %c0_2 = arith.constant 0 : index
    %2 = vector.load %arg2[%c0_1, %c0_2] : memref<64x32xbf16, #tpu.memory_space<vmem>>, vector<64x32xbf16>
    %c0_3 = arith.constant 0 : index
    %c0_4 = arith.constant 0 : index
    %3 = vector.load %arg3[%c0_3, %c0_4] : memref<64x1xf32, #tpu.memory_space<vmem>>, vector<64x1xf32>
    %cst = arith.constant dense<0.000000e+00> : vector<64x512xf32>
    %4 = tpu.matmul %2, %1, %cst {dimension_numbers = #tpu.dot_dimension_numbers<[1], [0], [0], [1], [0, 0, 1, 1], [], []>} : vector<64x32xbf16>, vector<32x512xbf16>, vector<64x512xf32> -> vector<64x512xf32>
    %5 = vector.broadcast %3 : vector<64x1xf32> to vector<64x512xf32>
    %6 = arith.addf %4, %5 : vector<64x512xf32>
    %cst_5 = arith.constant 0.000000e+00 : f32
    %7 = vector.broadcast %cst_5 : f32 to vector<64x512xf32>
    %8 = arith.maximumf %6, %7 : vector<64x512xf32>
    %9 = arith.truncf %8 : vector<64x512xf32> to vector<64x512xbf16>
    %c0_6 = arith.constant 0 : index
    %c0_7 = arith.constant 0 : index
    %10 = vector.load %arg4[%c0_6, %c0_7] : memref<16x64xbf16, #tpu.memory_space<vmem>>, vector<16x64xbf16>
    %c0_8 = arith.constant 0 : index
    %c0_9 = arith.constant 0 : index
    %11 = vector.load %arg5[%c0_8, %c0_9] : memref<16x1xf32, #tpu.memory_space<vmem>>, vector<16x1xf32>
    %cst_10 = arith.constant dense<0.000000e+00> : vector<16x512xf32>
    %12 = tpu.matmul %10, %9, %cst_10 {dimension_numbers = #tpu.dot_dimension_numbers<[1], [0], [0], [1], [0, 0, 1, 1], [], []>} : vector<16x64xbf16>, vector<64x512xbf16>, vector<16x512xf32> -> vector<16x512xf32>
    %13 = vector.broadcast %11 : vector<16x1xf32> to vector<16x512xf32>
    %14 = arith.addf %12, %13 : vector<16x512xf32>
    %cst_11 = arith.constant 0.000000e+00 : f32
    %15 = vector.broadcast %cst_11 : f32 to vector<16x512xf32>
    %16 = arith.maximumf %14, %15 : vector<16x512xf32>
    %17 = arith.truncf %16 : vector<16x512xf32> to vector<16x512xbf16>
    %c0_12 = arith.constant 0 : index
    %c0_13 = arith.constant 0 : index
    %18 = vector.load %arg6[%c0_12, %c0_13] : memref<64x16xbf16, #tpu.memory_space<vmem>>, vector<64x16xbf16>
    %c0_14 = arith.constant 0 : index
    %c0_15 = arith.constant 0 : index
    %19 = vector.load %arg7[%c0_14, %c0_15] : memref<64x1xf32, #tpu.memory_space<vmem>>, vector<64x1xf32>
    %cst_16 = arith.constant dense<0.000000e+00> : vector<64x512xf32>
    %20 = tpu.matmul %18, %17, %cst_16 {dimension_numbers = #tpu.dot_dimension_numbers<[1], [0], [0], [1], [0, 0, 1, 1], [], []>} : vector<64x16xbf16>, vector<16x512xbf16>, vector<64x512xf32> -> vector<64x512xf32>
    %21 = vector.broadcast %19 : vector<64x1xf32> to vector<64x512xf32>
    %22 = arith.addf %20, %21 : vector<64x512xf32>
    %cst_17 = arith.constant 0.000000e+00 : f32
    %23 = vector.broadcast %cst_17 : f32 to vector<64x512xf32>
    %24 = arith.maximumf %22, %23 : vector<64x512xf32>
    %25 = arith.truncf %24 : vector<64x512xf32> to vector<64x512xbf16>
    %c0_18 = arith.constant 0 : index
    %c0_19 = arith.constant 0 : index
    %26 = vector.load %arg8[%c0_18, %c0_19] : memref<32x64xbf16, #tpu.memory_space<vmem>>, vector<32x64xbf16>
    %c0_20 = arith.constant 0 : index
    %c0_21 = arith.constant 0 : index
    %27 = vector.load %arg9[%c0_20, %c0_21] : memref<32x1xf32, #tpu.memory_space<vmem>>, vector<32x1xf32>
    %cst_22 = arith.constant dense<0.000000e+00> : vector<32x512xf32>
    %28 = tpu.matmul %26, %25, %cst_22 {dimension_numbers = #tpu.dot_dimension_numbers<[1], [0], [0], [1], [0, 0, 1, 1], [], []>} : vector<32x64xbf16>, vector<64x512xbf16>, vector<32x512xf32> -> vector<32x512xf32>
    %29 = vector.broadcast %27 : vector<32x1xf32> to vector<32x512xf32>
    %30 = arith.addf %28, %29 : vector<32x512xf32>
    %31 = arith.negf %30 : vector<32x512xf32>
    %32 = math.exp %31 : vector<32x512xf32>
    %cst_23 = arith.constant 1.000000e+00 : f32
    %33 = vector.broadcast %cst_23 : f32 to vector<32x512xf32>
    %34 = arith.addf %33, %32 : vector<32x512xf32>
    %35 = arith.divf %33, %34 : vector<32x512xf32>
    %c0_24 = arith.constant 0 : index
    %c0_25 = arith.constant 0 : index
    %36 = vector.load %arg10[%c0_24, %c0_25] : memref<32x512xf32, #tpu.memory_space<vmem>>, vector<32x512xf32>
    tpu.vector_store %arg10[%c0_24, %c0_25], %35 {strides = array<i32>} : memref<32x512xf32, #tpu.memory_space<vmem>>, vector<32x512xf32>,
    return
  }
  func.func @transform_0(%arg0: i32) -> (i32, i32) {
    %c0_i32 = arith.constant 0 : i32
    %c0_i32_0 = arith.constant 0 : i32
    return %c0_i32, %arg0 : i32, i32
  }
  func.func @transform_1(%arg0: i32) -> (i32, i32) {
    %c0_i32 = arith.constant 0 : i32
    %c0_i32_0 = arith.constant 0 : i32
    %c0_i32_1 = arith.constant 0 : i32
    return %c0_i32, %c0_i32_0 : i32, i32
  }
  func.func @transform_2(%arg0: i32) -> (i32, i32) {
    %c0_i32 = arith.constant 0 : i32
    %c0_i32_0 = arith.constant 0 : i32
    %c0_i32_1 = arith.constant 0 : i32
    return %c0_i32, %c0_i32_0 : i32, i32
  }
  func.func @transform_3(%arg0: i32) -> (i32, i32) {
    %c0_i32 = arith.constant 0 : i32
    %c0_i32_0 = arith.constant 0 : i32
    %c0_i32_1 = arith.constant 0 : i32
    return %c0_i32, %c0_i32_0 : i32, i32
  }
  func.func @transform_4(%arg0: i32) -> (i32, i32) {
    %c0_i32 = arith.constant 0 : i32
    %c0_i32_0 = arith.constant 0 : i32
    %c0_i32_1 = arith.constant 0 : i32
    return %c0_i32, %c0_i32_0 : i32, i32
  }
  func.func @transform_5(%arg0: i32) -> (i32, i32) {
    %c0_i32 = arith.constant 0 : i32
    %c0_i32_0 = arith.constant 0 : i32
    %c0_i32_1 = arith.constant 0 : i32
    return %c0_i32, %c0_i32_0 : i32, i32
  }
  func.func @transform_6(%arg0: i32) -> (i32, i32) {
    %c0_i32 = arith.constant 0 : i32
    %c0_i32_0 = arith.constant 0 : i32
    %c0_i32_1 = arith.constant 0 : i32
    return %c0_i32, %c0_i32_0 : i32, i32
  }
  func.func @transform_7(%arg0: i32) -> (i32, i32) {
    %c0_i32 = arith.constant 0 : i32
    %c0_i32_0 = arith.constant 0 : i32
    %c0_i32_1 = arith.constant 0 : i32
    return %c0_i32, %c0_i32_0 : i32, i32
  }
  func.func @transform_8(%arg0: i32) -> (i32, i32) {
    %c0_i32 = arith.constant 0 : i32
    %c0_i32_0 = arith.constant 0 : i32
    %c0_i32_1 = arith.constant 0 : i32
    return %c0_i32, %c0_i32_0 : i32, i32
  }
  func.func @transform_9(%arg0: i32) -> (i32, i32) {
    %c0_i32 = arith.constant 0 : i32
    %c0_i32_0 = arith.constant 0 : i32
    return %c0_i32, %arg0 : i32, i32
  }
}

</mosaic_0001>

<llo_original>
// kernel: tpu_custom_call.1
$region0: #{tpu_custom_call.1}
  #allocation0 [shape = 'u32[]', space=smem, size = 0x4, offset = 0x4, fixed_abs, tag = 'smem constant byte address 0x4 - core index']
  #allocation1 [shape = 'u32[144,128]{1,0:T(1,128)}', space=vmem, size = 0x12000, scoped, tag = 'internal scratch']
  %s0 = inlined_call_operand.vmem [shape: f32[32,512], index: 0, kind: input, shape index: {}]
  %s1 = inlined_call_operand.vmem [shape: bf16[64,32], index: 1, kind: input, shape index: {}]
  %s2 = inlined_call_operand.vmem [shape: f32[64,1], index: 2, kind: input, shape index: {}]
  %s3 = inlined_call_operand.vmem [shape: bf16[16,64], index: 3, kind: input, shape index: {}]
  %s4 = inlined_call_operand.vmem [shape: f32[16,1], index: 4, kind: input, shape index: {}]
  %s5 = inlined_call_operand.vmem [shape: bf16[64,16], index: 5, kind: input, shape index: {}]
  %s6 = inlined_call_operand.vmem [shape: f32[64,1], index: 6, kind: input, shape index: {}]
  %s7 = inlined_call_operand.vmem [shape: bf16[32,64], index: 7, kind: input, shape index: {}]
  %s8 = inlined_call_operand.vmem [shape: f32[32,1], index: 8, kind: input, shape index: {}]
  %s9 = inlined_call_operand.hbm [shape: f32[32,512], index: 9, kind: output, shape index: {}]
  %s10 = sld [smem:[#allocation0]]
  $region46: #{tpu_custom_call.1} parent=0
    _
  %s12 = ssub.s32 1, %s10
  %s13 = scalar_select 0, %s12, %s10
  $region1: #{tpu_custom_call.1} parent=0
    #allocation2 [shape = 'u8[65536]{0}', space=vmem, size = 0x10000, scoped, tag = 'output window, operand 0, single buffered']
    #allocation3 [shape = 's32[1]{0}', space=sflag, size = 0x4, scoped, tag = 'scoped memory for tpu_custom_call.1']
    %14 = vsyncpa [#allocation3], 0
    // Predicated region
    $region2: #{tpu_custom_call.1} parent=1 // pred_check
      _
    $region3: #{tpu_custom_call.1} parent=1 // pred_check_branch
      %16 = sbr.rel (0) target = $region5
    $region4: #{tpu_custom_call.1} parent=1 // pred_region
      _
    $region5: #{tpu_custom_call.1} parent=1 // pred_fallthru
      _
    // Predicated region
    $region6: #{tpu_custom_call.1} parent=1 // pred_check
      _
    $region7: #{tpu_custom_call.1} parent=1 // pred_check_branch
      %18 = sbr.rel (0) target = $region9
    $region8: #{tpu_custom_call.1} parent=1 // pred_region
      _
    $region9: #{tpu_custom_call.1} parent=1 // pred_fallthru
      _
    // Predicated region
    $region10: #{tpu_custom_call.1} parent=1 // pred_check
      _
    $region11: #{tpu_custom_call.1} parent=1 // pred_check_branch
      %20 = sbr.rel (0) target = $region13
    $region12: #{tpu_custom_call.1} parent=1 // pred_region
      _
    $region13: #{tpu_custom_call.1} parent=1 // pred_fallthru
      _
    // Predicated region
    $region14: #{tpu_custom_call.1} parent=1 // pred_check
      _
    $region15: #{tpu_custom_call.1} parent=1 // pred_check_branch
      %22 = sbr.rel (0) target = $region17
    $region16: #{tpu_custom_call.1} parent=1 // pred_region
      _
    $region17: #{tpu_custom_call.1} parent=1 // pred_fallthru
      _
    // Predicated region
    $region18: #{tpu_custom_call.1} parent=1 // pred_check
      _
    $region19: #{tpu_custom_call.1} parent=1 // pred_check_branch
      %24 = sbr.rel (0) target = $region21
    $region20: #{tpu_custom_call.1} parent=1 // pred_region
      _
    $region21: #{tpu_custom_call.1} parent=1 // pred_fallthru
      _
    // Predicated region
    $region22: #{tpu_custom_call.1} parent=1 // pred_check
      _
    $region23: #{tpu_custom_call.1} parent=1 // pred_check_branch
      %26 = sbr.rel (0) target = $region25
    $region24: #{tpu_custom_call.1} parent=1 // pred_region
      _
    $region25: #{tpu_custom_call.1} parent=1 // pred_fallthru
      _
    // Predicated region
    $region26: #{tpu_custom_call.1} parent=1 // pred_check
      _
    $region27: #{tpu_custom_call.1} parent=1 // pred_check_branch
      %28 = sbr.rel (0) target = $region29
    $region28: #{tpu_custom_call.1} parent=1 // pred_region
      _
    $region29: #{tpu_custom_call.1} parent=1 // pred_fallthru
      _
    // Predicated region
    $region30: #{tpu_custom_call.1} parent=1 // pred_check
      _
    $region31: #{tpu_custom_call.1} parent=1 // pred_check_branch
      %30 = sbr.rel (0) target = $region33
    $region32: #{tpu_custom_call.1} parent=1 // pred_region
      _
    $region33: #{tpu_custom_call.1} parent=1 // pred_fallthru
      _
    // Predicated region
    $region34: #{tpu_custom_call.1} parent=1 // pred_check
      _
    $region35: #{tpu_custom_call.1} parent=1 // pred_check_branch
      %32 = sbr.rel (0) target = $region37
    $region36: #{tpu_custom_call.1} parent=1 // pred_region
      _
    $region37: #{tpu_custom_call.1} parent=1 // pred_fallthru
      _
    %v34 = vld [vmem:[%s0] sm:$0xff]
    %v35 = vld [vmem:[%s0 + $0x8] sm:$0xff]
    %v36 = vld [vmem:[%s0 + $0x10] sm:$0xff]
    %v37 = vld [vmem:[%s0 + $0x18] sm:$0xff]
    %v38 = vld [vmem:[%s0 + $0x20] sm:$0xff]
    %v39 = vld [vmem:[%s0 + $0x28] sm:$0xff]
    %v40 = vld [vmem:[%s0 + $0x30] sm:$0xff]
    %v41 = vld [vmem:[%s0 + $0x38] sm:$0xff]
    %v42 = vld [vmem:[%s0 + $0x40] sm:$0xff]
    %v43 = vld [vmem:[%s0 + $0x48] sm:$0xff]
    %v44 = vld [vmem:[%s0 + $0x50] sm:$0xff]
    %v45 = vld [vmem:[%s0 + $0x58] sm:$0xff]
    %v46 = vld [vmem:[%s0 + $0x60] sm:$0xff]
    %v47 = vld [vmem:[%s0 + $0x68] sm:$0xff]
    %v48 = vld [vmem:[%s0 + $0x70] sm:$0xff]
    %v49 = vld [vmem:[%s0 + $0x78] sm:$0xff]
    %v50 = vpack.c.bf16 %v38, %v34
    %v51 = vpack.c.bf16 %v39, %v35
    %v52 = vpack.c.bf16 %v40, %v36
    %v53 = vpack.c.bf16 %v41, %v37
    %v54 = vpack.c.bf16 %v46, %v42
    %v55 = vpack.c.bf16 %v47, %v43
    %v56 = vpack.c.bf16 %v48, %v44
    %v57 = vpack.c.bf16 %v49, %v45
    %v58 = vld [vmem:[%s1] sm:$0xf]
    %v59 = vld [vmem:[%s1 + $0x4] sm:$0xf]
    %v60 = vld [vmem:[%s1 + $0x8] sm:$0xf]
    %v61 = vld [vmem:[%s1 + $0xc] sm:$0xf]
    %v62 = vld [vmem:[%s1 + $0x10] sm:$0xf]
    %v63 = vld [vmem:[%s1 + $0x14] sm:$0xf]
    %v64 = vld [vmem:[%s1 + $0x18] sm:$0xf]
    %v65 = vld [vmem:[%s1 + $0x1c] sm:$0xf]
    %v66 = vld [vmem:[%s2] sm:$0xff]
    %v67 = vld [vmem:[%s2 + $0x8] sm:$0xff]
    %v68 = vld [vmem:[%s2 + $0x10] sm:$0xff]
    %v69 = vld [vmem:[%s2 + $0x18] sm:$0xff]
    %v70 = vld [vmem:[%s2 + $0x20] sm:$0xff]
    %v71 = vld [vmem:[%s2 + $0x28] sm:$0xff]
    %v72 = vld [vmem:[%s2 + $0x30] sm:$0xff]
    %v73 = vld [vmem:[%s2 + $0x38] sm:$0xff]
    %75 = vset.pattern.permute.xlu0 0
    %76 = vperm.xlu0 %75, %v66
    %v77 = vpop.permute.xlu0 %76
    %80 = vset.pattern.permute.xlu0 0
    %81 = vperm.xlu0 %80, %v67
    %v82 = vpop.permute.xlu0 %81
    %85 = vset.pattern.permute.xlu0 0
    %86 = vperm.xlu0 %85, %v68
    %v87 = vpop.permute.xlu0 %86
    %90 = vset.pattern.permute.xlu0 0
    %91 = vperm.xlu0 %90, %v69
    %v92 = vpop.permute.xlu0 %91
    %95 = vset.pattern.permute.xlu0 0
    %96 = vperm.xlu0 %95, %v70
    %v97 = vpop.permute.xlu0 %96
    %100 = vset.pattern.permute.xlu0 0
    %101 = vperm.xlu0 %100, %v71
    %v102 = vpop.permute.xlu0 %101
    %105 = vset.pattern.permute.xlu0 0
    %106 = vperm.xlu0 %105, %v72
    %v107 = vpop.permute.xlu0 %106
    %110 = vset.pattern.permute.xlu0 0
    %111 = vperm.xlu0 %110, %v73
    %v112 = vpop.permute.xlu0 %111
    %v122 = vunpack.c.l.b16 %v58
    %v123 = vunpack.c.l.b16 %v59
    %v124 = vunpack.c.l.b16 %v60
    %v125 = vunpack.c.l.b16 %v61
    %v126 = vunpack.c.l.b16 %v62
    %v127 = vunpack.c.l.b16 %v63
    %v128 = vunpack.c.l.b16 %v64
    %v129 = vunpack.c.l.b16 %v65
    %v130 = vpack.c.b16 %v123, %v122
    %v131 = vpack.c.b16 %v125, %v124
    %v132 = vpack.c.b16 %v127, %v126
    %v133 = vpack.c.b16 %v129, %v128
    %vm134 = vcmask 261120
    %v136 = vsel %vm134, %v130, 0
    %v139 = vsel %vm134, %v131, 0
    %v142 = vsel %vm134, %v132, 0
    %v145 = vsel %vm134, %v133, 0
    %147 = vmatprep.subr.bf16.mxu0 %v51
    %148 = vmatpush1.bf16.msra.mxu0 %v50
    %149 = vmatprep.subr.bf16.mxu0 %v55
    %150 = vmatpush1.bf16.msra.mxu0 %v54
    %151 = vmatprep.subr.bf16.mxu0 0
    %152 = vmatpush1.bf16.msra.mxu0 0
    %153 = vmatprep.subr.bf16.mxu0 0
    %154 = vmatpush1.bf16.msra.mxu0 0
    %155 = vmatprep.subr.bf16.mxu0 0
    %156 = vmatpush1.bf16.msra.mxu0 0
    %157 = vmatprep.subr.bf16.mxu0 0
    %158 = vmatpush1.bf16.msra.mxu0 0
    %159 = vmatprep.subr.bf16.mxu0 0
    %160 = vmatpush1.bf16.msra.mxu0 0
    %161 = vmatprep.subr.bf16.mxu0 0
    %162 = vmatpush1.bf16.msra.mxu0 0
    %163 = vmatprep.subr.bf16.mxu0 0
    %164 = vmatpush1.bf16.msra.mxu0 0
    %165 = vmatprep.subr.bf16.mxu0 0
    %166 = vmatpush1.bf16.msra.mxu0 0
    %167 = vmatprep.subr.bf16.mxu0 0
    %168 = vmatpush1.bf16.msra.mxu0 0
    %169 = vmatprep.subr.bf16.mxu0 0
    %170 = vmatpush1.bf16.msra.mxu0 0
    %171 = vmatprep.subr.bf16.mxu0 0
    %172 = vmatpush1.bf16.msra.mxu0 0
    %173 = vmatprep.subr.bf16.mxu0 0
    %174 = vmatpush1.bf16.msra.mxu0 0
    %175 = vmatprep.subr.bf16.mxu0 0
    %176 = vmatpush1.bf16.msra.mxu0 0
    %177 = vmatprep.subr.bf16.mxu0 0
    %178 = vmatpush1.bf16.msra.mxu0 0
    %179 = vmatprep.mubr.bf16.mxu0 0
    %180 = vmatmul.mubr.bf16.gmra.mrb[0].mxu0 %v136
    %v181 = vpop.f32.mrb[0].mxu0
    %v182 = vadd.f32 %v77, %v181
    %v183 = vpop.f32.mrb[0].mxu0
    %v184 = vadd.f32 %v77, %v183
    %v185 = vpop.f32.mrb[0].mxu0
    %v186 = vadd.f32 %v82, %v185
    %v187 = vpop.f32.mrb[0].mxu0
    %v188 = vadd.f32 %v82, %v187
    %189 = vmatprep.mubr.bf16.mxu0 0
    %190 = vmatmul.mubr.bf16.gmra.mrb[0].mxu0 %v139
    %v191 = vpop.f32.mrb[0].mxu0
    %v192 = vadd.f32 %v87, %v191
    %v193 = vpop.f32.mrb[0].mxu0
    %v194 = vadd.f32 %v87, %v193
    %v195 = vpop.f32.mrb[0].mxu0
    %v196 = vadd.f32 %v92, %v195
    %v197 = vpop.f32.mrb[0].mxu0
    %v198 = vadd.f32 %v92, %v197
    %199 = vmatprep.mubr.bf16.mxu0 0
    %200 = vmatmul.mubr.bf16.gmra.mrb[0].mxu0 %v142
    %v201 = vpop.f32.mrb[0].mxu0
    %v202 = vadd.f32 %v97, %v201
    %v203 = vpop.f32.mrb[0].mxu0
    %v204 = vadd.f32 %v97, %v203
    %v205 = vpop.f32.mrb[0].mxu0
    %v206 = vadd.f32 %v102, %v205
    %v207 = vpop.f32.mrb[0].mxu0
    %v208 = vadd.f32 %v102, %v207
    %209 = vmatprep.mubr.bf16.mxu0 0
    %210 = vmatmul.mubr.bf16.gmra.mrb[0].mxu0 %v145
    %v211 = vpop.f32.mrb[0].mxu0
    %v212 = vadd.f32 %v107, %v211
    %v213 = vpop.f32.mrb[0].mxu0
    %v214 = vadd.f32 %v107, %v213
    %v215 = vpop.f32.mrb[0].mxu0
    %v216 = vadd.f32 %v112, %v215
    %v217 = vpop.f32.mrb[0].mxu0
    %v218 = vadd.f32 %v112, %v217
    %219 = vdwg.mxu0
    %220 = vmatprep.subr.bf16.mxu0 %v53
    %221 = vmatpush1.bf16.msra.mxu0 %v52
    %222 = vmatprep.subr.bf16.mxu0 %v57
    %223 = vmatpush1.bf16.msra.mxu0 %v56
    %224 = vmatprep.subr.bf16.mxu0 0
    %225 = vmatpush1.bf16.msra.mxu0 0
    %226 = vmatprep.subr.bf16.mxu0 0
    %227 = vmatpush1.bf16.msra.mxu0 0
    %228 = vmatprep.subr.bf16.mxu0 0
    %229 = vmatpush1.bf16.msra.mxu0 0
    %230 = vmatprep.subr.bf16.mxu0 0
    %231 = vmatpush1.bf16.msra.mxu0 0
    %232 = vmatprep.subr.bf16.mxu0 0
    %233 = vmatpush1.bf16.msra.mxu0 0
    %234 = vmatprep.subr.bf16.mxu0 0
    %235 = vmatpush1.bf16.msra.mxu0 0
    %236 = vmatprep.subr.bf16.mxu0 0
    %237 = vmatpush1.bf16.msra.mxu0 0
    %238 = vmatprep.subr.bf16.mxu0 0
    %239 = vmatpush1.bf16.msra.mxu0 0
    %240 = vmatprep.subr.bf16.mxu0 0
    %241 = vmatpush1.bf16.msra.mxu0 0
    %242 = vmatprep.subr.bf16.mxu0 0
    %243 = vmatpush1.bf16.msra.mxu0 0
    %244 = vmatprep.subr.bf16.mxu0 0
    %245 = vmatpush1.bf16.msra.mxu0 0
    %246 = vmatprep.subr.bf16.mxu0 0
    %247 = vmatpush1.bf16.msra.mxu0 0
    %248 = vmatprep.subr.bf16.mxu0 0
    %249 = vmatpush1.bf16.msra.mxu0 0
    %250 = vmatprep.subr.bf16.mxu0 0
    %251 = vmatpush1.bf16.msra.mxu0 0
    %252 = vmatprep.mubr.bf16.mxu0 0
    %253 = vmatmul.mubr.bf16.gmra.mrb[0].mxu0 %v136
    %v254 = vpop.f32.mrb[0].mxu0
    %v255 = vadd.f32 %v77, %v254
    %v256 = vpop.f32.mrb[0].mxu0
    %v257 = vadd.f32 %v77, %v256
    %v258 = vpop.f32.mrb[0].mxu0
    %v259 = vadd.f32 %v82, %v258
    %v260 = vpop.f32.mrb[0].mxu0
    %v261 = vadd.f32 %v82, %v260
    %262 = vmatprep.mubr.bf16.mxu0 0
    %263 = vmatmul.mubr.bf16.gmra.mrb[0].mxu0 %v139
    %v264 = vpop.f32.mrb[0].mxu0
    %v265 = vadd.f32 %v87, %v264
    %v266 = vpop.f32.mrb[0].mxu0
    %v267 = vadd.f32 %v87, %v266
    %v268 = vpop.f32.mrb[0].mxu0
    %v269 = vadd.f32 %v92, %v268
    %v270 = vpop.f32.mrb[0].mxu0
    %v271 = vadd.f32 %v92, %v270
    %272 = vmatprep.mubr.bf16.mxu0 0
    %273 = vmatmul.mubr.bf16.gmra.mrb[0].mxu0 %v142
    %v274 = vpop.f32.mrb[0].mxu0
    %v275 = vadd.f32 %v97, %v274
    %v276 = vpop.f32.mrb[0].mxu0
    %v277 = vadd.f32 %v97, %v276
    %v278 = vpop.f32.mrb[0].mxu0
    %v279 = vadd.f32 %v102, %v278
    %v280 = vpop.f32.mrb[0].mxu0
    %v281 = vadd.f32 %v102, %v280
    %282 = vmatprep.mubr.bf16.mxu0 0
    %283 = vmatmul.mubr.bf16.gmra.mrb[0].mxu0 %v145
    %v284 = vpop.f32.mrb[0].mxu0
    %v285 = vadd.f32 %v107, %v284
    %v286 = vpop.f32.mrb[0].mxu0
    %v287 = vadd.f32 %v107, %v286
    %v288 = vpop.f32.mrb[0].mxu0
    %v289 = vadd.f32 %v112, %v288
    %v290 = vpop.f32.mrb[0].mxu0
    %v291 = vadd.f32 %v112, %v290
    %292 = vdwg.mxu0
    %v293 = vmax.f32 %v182, 0.0
    %v294 = vmax.f32 %v184, 0.0
    %v295 = vmax.f32 %v255, 0.0
    %v296 = vmax.f32 %v257, 0.0
    %v297 = vmax.f32 %v186, 0.0
    %v298 = vmax.f32 %v188, 0.0
    %v299 = vmax.f32 %v259, 0.0
    %v300 = vmax.f32 %v261, 0.0
    %v301 = vmax.f32 %v192, 0.0
    %v302 = vmax.f32 %v194, 0.0
    %v303 = vmax.f32 %v265, 0.0
    %v304 = vmax.f32 %v267, 0.0
    %v305 = vmax.f32 %v196, 0.0
    %v306 = vmax.f32 %v198, 0.0
    %v307 = vmax.f32 %v269, 0.0
    %v308 = vmax.f32 %v271, 0.0
    %v309 = vmax.f32 %v202, 0.0
    %v310 = vmax.f32 %v204, 0.0
    %v311 = vmax.f32 %v275, 0.0
    %v312 = vmax.f32 %v277, 0.0
    %v313 = vmax.f32 %v206, 0.0
    %v314 = vmax.f32 %v208, 0.0
    %v315 = vmax.f32 %v279, 0.0
    %v316 = vmax.f32 %v281, 0.0
    %v317 = vmax.f32 %v212, 0.0
    %v318 = vmax.f32 %v214, 0.0
    %v319 = vmax.f32 %v285, 0.0
    %v320 = vmax.f32 %v287, 0.0
    %v321 = vmax.f32 %v216, 0.0
    %v322 = vmax.f32 %v218, 0.0
    %v323 = vmax.f32 %v289, 0.0
    %v324 = vmax.f32 %v291, 0.0
    %v325 = vpack.c.bf16 %v297, %v293
    %v326 = vpack.c.bf16 %v298, %v294
    %v327 = vpack.c.bf16 %v299, %v295
    %v328 = vpack.c.bf16 %v300, %v296
    %v329 = vpack.c.bf16 %v305, %v301
    %v330 = vpack.c.bf16 %v306, %v302
    %v331 = vpack.c.bf16 %v307, %v303
    %v332 = vpack.c.bf16 %v308, %v304
    %v333 = vpack.c.bf16 %v313, %v309
    %v334 = vpack.c.bf16 %v314, %v310
    %v335 = vpack.c.bf16 %v315, %v311
    %v336 = vpack.c.bf16 %v316, %v312
    %v337 = vpack.c.bf16 %v321, %v317
    %v338 = vpack.c.bf16 %v322, %v318
    %v339 = vpack.c.bf16 %v323, %v319
    %v340 = vpack.c.bf16 %v324, %v320
    %v341 = vld [vmem:[%s3] sm:$0xf]
    %v342 = vld [vmem:[%s3 + $0x4] sm:$0xf]
    %v343 = vld [vmem:[%s4] sm:$0xff]
    %v344 = vld [vmem:[%s4 + $0x8] sm:$0xff]
    %346 = vset.pattern.permute.xlu0 0
    %347 = vperm.xlu0 %346, %v343
    %v348 = vpop.permute.xlu0 %347
    %351 = vset.pattern.permute.xlu0 0
    %352 = vperm.xlu0 %351, %v344
    %v353 = vpop.permute.xlu0 %352
    %v357 = vunpack.c.l.b16 %v341
    %v358 = vunpack.c.l.b16 %v342
    %v359 = vpack.c.b16 %v358, %v357
    %vm360 = vcmask 523264
    %v362 = vsel %vm360, %v359, 0
    %364 = vmatprep.subr.bf16.mxu0 %v326
    %365 = vmatpush1.bf16.msra.mxu0 %v325
    %366 = vmatprep.subr.bf16.mxu0 %v330
    %367 = vmatpush1.bf16.msra.mxu0 %v329
    %368 = vmatprep.subr.bf16.mxu0 %v334
    %369 = vmatpush1.bf16.msra.mxu0 %v333
    %370 = vmatprep.subr.bf16.mxu0 %v338
    %371 = vmatpush1.bf16.msra.mxu0 %v337
    %372 = vmatprep.subr.bf16.mxu0 0
    %373 = vmatpush1.bf16.msra.mxu0 0
    %374 = vmatprep.subr.bf16.mxu0 0
    %375 = vmatpush1.bf16.msra.mxu0 0
    %376 = vmatprep.subr.bf16.mxu0 0
    %377 = vmatpush1.bf16.msra.mxu0 0
    %378 = vmatprep.subr.bf16.mxu0 0
    %379 = vmatpush1.bf16.msra.mxu0 0
    %380 = vmatprep.subr.bf16.mxu0 0
    %381 = vmatpush1.bf16.msra.mxu0 0
    %382 = vmatprep.subr.bf16.mxu0 0
    %383 = vmatpush1.bf16.msra.mxu0 0
    %384 = vmatprep.subr.bf16.mxu0 0
    %385 = vmatpush1.bf16.msra.mxu0 0
    %386 = vmatprep.subr.bf16.mxu0 0
    %387 = vmatpush1.bf16.msra.mxu0 0
    %388 = vmatprep.subr.bf16.mxu0 0
    %389 = vmatpush1.bf16.msra.mxu0 0
    %390 = vmatprep.subr.bf16.mxu0 0
    %391 = vmatpush1.bf16.msra.mxu0 0
    %392 = vmatprep.subr.bf16.mxu0 0
    %393 = vmatpush1.bf16.msra.mxu0 0
    %394 = vmatprep.subr.bf16.mxu0 0
    %395 = vmatpush1.bf16.msra.mxu0 0
    %396 = vmatprep.mubr.bf16.mxu0 0
    %397 = vmatmul.mubr.bf16.gmra.mrb[0].mxu0 %v362
    %v398 = vpop.f32.mrb[0].mxu0
    %v399 = vadd.f32 %v348, %v398
    %v400 = vpop.f32.mrb[0].mxu0
    %v401 = vadd.f32 %v348, %v400
    %v402 = vpop.f32.mrb[0].mxu0
    %v403 = vadd.f32 %v353, %v402
    %v404 = vpop.f32.mrb[0].mxu0
    %v405 = vadd.f32 %v353, %v404
    %406 = vdwg.mxu0
    %407 = vmatprep.subr.bf16.mxu0 %v328
    %408 = vmatpush1.bf16.msra.mxu0 %v327
    %409 = vmatprep.subr.bf16.mxu0 %v332
    %410 = vmatpush1.bf16.msra.mxu0 %v331
    %411 = vmatprep.subr.bf16.mxu0 %v336
    %412 = vmatpush1.bf16.msra.mxu0 %v335
    %413 = vmatprep.subr.bf16.mxu0 %v340
    %414 = vmatpush1.bf16.msra.mxu0 %v339
    %415 = vmatprep.subr.bf16.mxu0 0
    %416 = vmatpush1.bf16.msra.mxu0 0
    %417 = vmatprep.subr.bf16.mxu0 0
    %418 = vmatpush1.bf16.msra.mxu0 0
    %419 = vmatprep.subr.bf16.mxu0 0
    %420 = vmatpush1.bf16.msra.mxu0 0
    %421 = vmatprep.subr.bf16.mxu0 0
    %422 = vmatpush1.bf16.msra.mxu0 0
    %423 = vmatprep.subr.bf16.mxu0 0
    %424 = vmatpush1.bf16.msra.mxu0 0
    %425 = vmatprep.subr.bf16.mxu0 0
    %426 = vmatpush1.bf16.msra.mxu0 0
    %427 = vmatprep.subr.bf16.mxu0 0
    %428 = vmatpush1.bf16.msra.mxu0 0
    %429 = vmatprep.subr.bf16.mxu0 0
    %430 = vmatpush1.bf16.msra.mxu0 0
    %431 = vmatprep.subr.bf16.mxu0 0
    %432 = vmatpush1.bf16.msra.mxu0 0
    %433 = vmatprep.subr.bf16.mxu0 0
    %434 = vmatpush1.bf16.msra.mxu0 0
    %435 = vmatprep.subr.bf16.mxu0 0
    %436 = vmatpush1.bf16.msra.mxu0 0
    %437 = vmatprep.subr.bf16.mxu0 0
    %438 = vmatpush1.bf16.msra.mxu0 0
    %439 = vmatprep.mubr.bf16.mxu0 0
    %440 = vmatmul.mubr.bf16.gmra.mrb[0].mxu0 %v362
    %v441 = vpop.f32.mrb[0].mxu0
    %v442 = vadd.f32 %v348, %v441
    %v443 = vpop.f32.mrb[0].mxu0
    %v444 = vadd.f32 %v348, %v443
    %v445 = vpop.f32.mrb[0].mxu0
    %v446 = vadd.f32 %v353, %v445
    %v447 = vpop.f32.mrb[0].mxu0
    %v448 = vadd.f32 %v353, %v447
    %449 = vdwg.mxu0
    %v450 = vmax.f32 %v399, 0.0
    %v451 = vmax.f32 %v401, 0.0
    %v452 = vmax.f32 %v442, 0.0
    %v453 = vmax.f32 %v444, 0.0
    %v454 = vmax.f32 %v403, 0.0
    %v455 = vmax.f32 %v405, 0.0
    %v456 = vmax.f32 %v446, 0.0
    %v457 = vmax.f32 %v448, 0.0
    %v458 = vpack.c.bf16 %v454, %v450
    %v459 = vpack.c.bf16 %v455, %v451
    %v460 = vpack.c.bf16 %v456, %v452
    %v461 = vpack.c.bf16 %v457, %v453
    %v462 = vld [vmem:[%s5] sm:$0xf]
    %v463 = vld [vmem:[%s5 + $0x4] sm:$0xf]
    %v464 = vld [vmem:[%s5 + $0x8] sm:$0xf]
    %v465 = vld [vmem:[%s5 + $0xc] sm:$0xf]
    %v466 = vld [vmem:[%s5 + $0x10] sm:$0xf]
    %v467 = vld [vmem:[%s5 + $0x14] sm:$0xf]
    %v468 = vld [vmem:[%s5 + $0x18] sm:$0xf]
    %v469 = vld [vmem:[%s5 + $0x1c] sm:$0xf]
    %v470 = vld [vmem:[%s6] sm:$0xff]
    %v471 = vld [vmem:[%s6 + $0x8] sm:$0xff]
    %v472 = vld [vmem:[%s6 + $0x10] sm:$0xff]
    %v473 = vld [vmem:[%s6 + $0x18] sm:$0xff]
    %v474 = vld [vmem:[%s6 + $0x20] sm:$0xff]
    %v475 = vld [vmem:[%s6 + $0x28] sm:$0xff]
    %v476 = vld [vmem:[%s6 + $0x30] sm:$0xff]
    %v477 = vld [vmem:[%s6 + $0x38] sm:$0xff]
    %479 = vset.pattern.permute.xlu0 0
    %480 = vperm.xlu0 %479, %v470
    %v481 = vpop.permute.xlu0 %480
    %484 = vset.pattern.permute.xlu0 0
    %485 = vperm.xlu0 %484, %v471
    %v486 = vpop.permute.xlu0 %485
    %489 = vset.pattern.permute.xlu0 0
    %490 = vperm.xlu0 %489, %v472
    %v491 = vpop.permute.xlu0 %490
    %494 = vset.pattern.permute.xlu0 0
    %495 = vperm.xlu0 %494, %v473
    %v496 = vpop.permute.xlu0 %495
    %499 = vset.pattern.permute.xlu0 0
    %500 = vperm.xlu0 %499, %v474
    %v501 = vpop.permute.xlu0 %500
    %504 = vset.pattern.permute.xlu0 0
    %505 = vperm.xlu0 %504, %v475
    %v506 = vpop.permute.xlu0 %505
    %509 = vset.pattern.permute.xlu0 0
    %510 = vperm.xlu0 %509, %v476
    %v511 = vpop.permute.xlu0 %510
    %514 = vset.pattern.permute.xlu0 0
    %515 = vperm.xlu0 %514, %v477
    %v516 = vpop.permute.xlu0 %515
    %v526 = vunpack.c.l.b16 %v462
    %v527 = vunpack.c.l.b16 %v463
    %v528 = vunpack.c.l.b16 %v464
    %v529 = vunpack.c.l.b16 %v465
    %v530 = vunpack.c.l.b16 %v466
    %v531 = vunpack.c.l.b16 %v467
    %v532 = vunpack.c.l.b16 %v468
    %v533 = vunpack.c.l.b16 %v469
    %v534 = vpack.c.b16 %v527, %v526
    %v535 = vpack.c.b16 %v529, %v528
    %v536 = vpack.c.b16 %v531, %v530
    %v537 = vpack.c.b16 %v533, %v532
    %vm538 = vcmask 130048
    %v540 = vsel %vm538, %v534, 0
    %v543 = vsel %vm538, %v535, 0
    %v546 = vsel %vm538, %v536, 0
    %v549 = vsel %vm538, %v537, 0
    %551 = vmatprep.subr.bf16.mxu0 %v459
    %552 = vmatpush1.bf16.msra.mxu0 %v458
    %553 = vmatprep.subr.bf16.mxu0 0
    %554 = vmatpush1.bf16.msra.mxu0 0
    %555 = vmatprep.subr.bf16.mxu0 0
    %556 = vmatpush1.bf16.msra.mxu0 0
    %557 = vmatprep.subr.bf16.mxu0 0
    %558 = vmatpush1.bf16.msra.mxu0 0
    %559 = vmatprep.subr.bf16.mxu0 0
    %560 = vmatpush1.bf16.msra.mxu0 0
    %561 = vmatprep.subr.bf16.mxu0 0
    %562 = vmatpush1.bf16.msra.mxu0 0
    %563 = vmatprep.subr.bf16.mxu0 0
    %564 = vmatpush1.bf16.msra.mxu0 0
    %565 = vmatprep.subr.bf16.mxu0 0
    %566 = vmatpush1.bf16.msra.mxu0 0
    %567 = vmatprep.subr.bf16.mxu0 0
    %568 = vmatpush1.bf16.msra.mxu0 0
    %569 = vmatprep.subr.bf16.mxu0 0
    %570 = vmatpush1.bf16.msra.mxu0 0
    %571 = vmatprep.subr.bf16.mxu0 0
    %572 = vmatpush1.bf16.msra.mxu0 0
    %573 = vmatprep.subr.bf16.mxu0 0
    %574 = vmatpush1.bf16.msra.mxu0 0
    %575 = vmatprep.subr.bf16.mxu0 0
    %576 = vmatpush1.bf16.msra.mxu0 0
    %577 = vmatprep.subr.bf16.mxu0 0
    %578 = vmatpush1.bf16.msra.mxu0 0
    %579 = vmatprep.subr.bf16.mxu0 0
    %580 = vmatpush1.bf16.msra.mxu0 0
    %581 = vmatprep.subr.bf16.mxu0 0
    %582 = vmatpush1.bf16.msra.mxu0 0
    %583 = vmatprep.mubr.bf16.mxu0 0
    %584 = vmatmul.mubr.bf16.gmra.mrb[0].mxu0 %v540
    %v585 = vpop.f32.mrb[0].mxu0
    %v586 = vadd.f32 %v481, %v585
    %v587 = vpop.f32.mrb[0].mxu0
    %v588 = vadd.f32 %v481, %v587
    %v589 = vpop.f32.mrb[0].mxu0
    %v590 = vadd.f32 %v486, %v589
    %v591 = vpop.f32.mrb[0].mxu0
    %v592 = vadd.f32 %v486, %v591
    %593 = vmatprep.mubr.bf16.mxu0 0
    %594 = vmatmul.mubr.bf16.gmra.mrb[0].mxu0 %v543
    %v595 = vpop.f32.mrb[0].mxu0
    %v596 = vadd.f32 %v491, %v595
    %v597 = vpop.f32.mrb[0].mxu0
    %v598 = vadd.f32 %v491, %v597
    %v599 = vpop.f32.mrb[0].mxu0
    %v600 = vadd.f32 %v496, %v599
    %v601 = vpop.f32.mrb[0].mxu0
    %v602 = vadd.f32 %v496, %v601
    %603 = vmatprep.mubr.bf16.mxu0 0
    %604 = vmatmul.mubr.bf16.gmra.mrb[0].mxu0 %v546
    %v605 = vpop.f32.mrb[0].mxu0
    %v606 = vadd.f32 %v501, %v605
    %v607 = vpop.f32.mrb[0].mxu0
    %v608 = vadd.f32 %v501, %v607
    %v609 = vpop.f32.mrb[0].mxu0
    %v610 = vadd.f32 %v506, %v609
    %v611 = vpop.f32.mrb[0].mxu0
    %v612 = vadd.f32 %v506, %v611
    %613 = vmatprep.mubr.bf16.mxu0 0
    %614 = vmatmul.mubr.bf16.gmra.mrb[0].mxu0 %v549
    %v615 = vpop.f32.mrb[0].mxu0
    %v616 = vadd.f32 %v511, %v615
    %v617 = vpop.f32.mrb[0].mxu0
    %v618 = vadd.f32 %v511, %v617
    %v619 = vpop.f32.mrb[0].mxu0
    %v620 = vadd.f32 %v516, %v619
    %v621 = vpop.f32.mrb[0].mxu0
    %v622 = vadd.f32 %v516, %v621
    %623 = vdwg.mxu0
    %624 = vmatprep.subr.bf16.mxu0 %v461
    %625 = vmatpush1.bf16.msra.mxu0 %v460
    %626 = vmatprep.subr.bf16.mxu0 0
    %627 = vmatpush1.bf16.msra.mxu0 0
    %628 = vmatprep.subr.bf16.mxu0 0
    %629 = vmatpush1.bf16.msra.mxu0 0
    %630 = vmatprep.subr.bf16.mxu0 0
    %631 = vmatpush1.bf16.msra.mxu0 0
    %632 = vmatprep.subr.bf16.mxu0 0
    %633 = vmatpush1.bf16.msra.mxu0 0
    %634 = vmatprep.subr.bf16.mxu0 0
    %635 = vmatpush1.bf16.msra.mxu0 0
    %636 = vmatprep.subr.bf16.mxu0 0
    %637 = vmatpush1.bf16.msra.mxu0 0
    %638 = vmatprep.subr.bf16.mxu0 0
    %639 = vmatpush1.bf16.msra.mxu0 0
    %640 = vmatprep.subr.bf16.mxu0 0
    %641 = vmatpush1.bf16.msra.mxu0 0
    %642 = vmatprep.subr.bf16.mxu0 0
    %643 = vmatpush1.bf16.msra.mxu0 0
    %644 = vmatprep.subr.bf16.mxu0 0
    %645 = vmatpush1.bf16.msra.mxu0 0
    %646 = vmatprep.subr.bf16.mxu0 0
    %647 = vmatpush1.bf16.msra.mxu0 0
    %648 = vmatprep.subr.bf16.mxu0 0
    %649 = vmatpush1.bf16.msra.mxu0 0
    %650 = vmatprep.subr.bf16.mxu0 0
    %651 = vmatpush1.bf16.msra.mxu0 0
    %652 = vmatprep.subr.bf16.mxu0 0
    %653 = vmatpush1.bf16.msra.mxu0 0
    %654 = vmatprep.subr.bf16.mxu0 0
    %655 = vmatpush1.bf16.msra.mxu0 0
    %656 = vmatprep.mubr.bf16.mxu0 0
    %657 = vmatmul.mubr.bf16.gmra.mrb[0].mxu0 %v540
    %v658 = vpop.f32.mrb[0].mxu0
    %v659 = vadd.f32 %v481, %v658
    %v660 = vpop.f32.mrb[0].mxu0
    %v661 = vadd.f32 %v481, %v660
    %v662 = vpop.f32.mrb[0].mxu0
    %v663 = vadd.f32 %v486, %v662
    %v664 = vpop.f32.mrb[0].mxu0
    %v665 = vadd.f32 %v486, %v664
    %666 = vmatprep.mubr.bf16.mxu0 0
    %667 = vmatmul.mubr.bf16.gmra.mrb[0].mxu0 %v543
    %v668 = vpop.f32.mrb[0].mxu0
    %v669 = vadd.f32 %v491, %v668
    %v670 = vpop.f32.mrb[0].mxu0
    %v671 = vadd.f32 %v491, %v670
    %v672 = vpop.f32.mrb[0].mxu0
    %v673 = vadd.f32 %v496, %v672
    %v674 = vpop.f32.mrb[0].mxu0
    %v675 = vadd.f32 %v496, %v674
    %676 = vmatprep.mubr.bf16.mxu0 0
    %677 = vmatmul.mubr.bf16.gmra.mrb[0].mxu0 %v546
    %v678 = vpop.f32.mrb[0].mxu0
    %v679 = vadd.f32 %v501, %v678
    %v680 = vpop.f32.mrb[0].mxu0
    %v681 = vadd.f32 %v501, %v680
    %v682 = vpop.f32.mrb[0].mxu0
    %v683 = vadd.f32 %v506, %v682
    %v684 = vpop.f32.mrb[0].mxu0
    %v685 = vadd.f32 %v506, %v684
    %686 = vmatprep.mubr.bf16.mxu0 0
    %687 = vmatmul.mubr.bf16.gmra.mrb[0].mxu0 %v549
    %v688 = vpop.f32.mrb[0].mxu0
    %v689 = vadd.f32 %v511, %v688
    %v690 = vpop.f32.mrb[0].mxu0
    %v691 = vadd.f32 %v511, %v690
    %v692 = vpop.f32.mrb[0].mxu0
    %v693 = vadd.f32 %v516, %v692
    %v694 = vpop.f32.mrb[0].mxu0
    %v695 = vadd.f32 %v516, %v694
    %696 = vdwg.mxu0
    %v697 = vmax.f32 %v586, 0.0
    %v698 = vmax.f32 %v588, 0.0
    %v699 = vmax.f32 %v659, 0.0
    %v700 = vmax.f32 %v661, 0.0
    %v701 = vmax.f32 %v590, 0.0
    %v702 = vmax.f32 %v592, 0.0
    %v703 = vmax.f32 %v663, 0.0
    %v704 = vmax.f32 %v665, 0.0
    %v705 = vmax.f32 %v596, 0.0
    %v706 = vmax.f32 %v598, 0.0
    %v707 = vmax.f32 %v669, 0.0
    %v708 = vmax.f32 %v671, 0.0
    %v709 = vmax.f32 %v600, 0.0
    %v710 = vmax.f32 %v602, 0.0
    %v711 = vmax.f32 %v673, 0.0
    %v712 = vmax.f32 %v675, 0.0
    %v713 = vmax.f32 %v606, 0.0
    %v714 = vmax.f32 %v608, 0.0
    %v715 = vmax.f32 %v679, 0.0
    %v716 = vmax.f32 %v681, 0.0
    %v717 = vmax.f32 %v610, 0.0
    %v718 = vmax.f32 %v612, 0.0
    %v719 = vmax.f32 %v683, 0.0
    %v720 = vmax.f32 %v685, 0.0
    %v721 = vmax.f32 %v616, 0.0
    %v722 = vmax.f32 %v618, 0.0
    %v723 = vmax.f32 %v689, 0.0
    %v724 = vmax.f32 %v691, 0.0
    %v725 = vmax.f32 %v620, 0.0
    %v726 = vmax.f32 %v622, 0.0
    %v727 = vmax.f32 %v693, 0.0
    %v728 = vmax.f32 %v695, 0.0
    %v729 = vpack.c.bf16 %v701, %v697
    %v730 = vpack.c.bf16 %v702, %v698
    %v731 = vpack.c.bf16 %v703, %v699
    %v732 = vpack.c.bf16 %v704, %v700
    %v733 = vpack.c.bf16 %v709, %v705
    %v734 = vpack.c.bf16 %v710, %v706
    %v735 = vpack.c.bf16 %v711, %v707
    %v736 = vpack.c.bf16 %v712, %v708
    %v737 = vpack.c.bf16 %v717, %v713
    %v738 = vpack.c.bf16 %v718, %v714
    %v739 = vpack.c.bf16 %v719, %v715
    %v740 = vpack.c.bf16 %v720, %v716
    %v741 = vpack.c.bf16 %v725, %v721
    %v742 = vpack.c.bf16 %v726, %v722
    %v743 = vpack.c.bf16 %v727, %v723
    %v744 = vpack.c.bf16 %v728, %v724
    %v745 = vld [vmem:[%s7] sm:$0xf]
    %v746 = vld [vmem:[%s7 + $0x4] sm:$0xf]
    %v747 = vld [vmem:[%s7 + $0x8] sm:$0xf]
    %v748 = vld [vmem:[%s7 + $0xc] sm:$0xf]
    %v749 = vld [vmem:[%s8] sm:$0xff]
    %v750 = vld [vmem:[%s8 + $0x8] sm:$0xff]
    %v751 = vld [vmem:[%s8 + $0x10] sm:$0xff]
    %v752 = vld [vmem:[%s8 + $0x18] sm:$0xff]
    %754 = vset.pattern.permute.xlu0 0
    %755 = vperm.xlu0 %754, %v749
    %v756 = vpop.permute.xlu0 %755
    %759 = vset.pattern.permute.xlu0 0
    %760 = vperm.xlu0 %759, %v750
    %v761 = vpop.permute.xlu0 %760
    %764 = vset.pattern.permute.xlu0 0
    %765 = vperm.xlu0 %764, %v751
    %v766 = vpop.permute.xlu0 %765
    %769 = vset.pattern.permute.xlu0 0
    %770 = vperm.xlu0 %769, %v752
    %v771 = vpop.permute.xlu0 %770
    %v777 = vunpack.c.l.b16 %v745
    %v778 = vunpack.c.l.b16 %v746
    %v779 = vunpack.c.l.b16 %v747
    %v780 = vunpack.c.l.b16 %v748
    %v781 = vpack.c.b16 %v778, %v777
    %v782 = vpack.c.b16 %v780, %v779
    %v784 = vsel %vm360, %v781, 0
    %v787 = vsel %vm360, %v782, 0
    %789 = vmatprep.subr.bf16.mxu0 %v730
    %790 = vmatpush1.bf16.msra.mxu0 %v729
    %791 = vmatprep.subr.bf16.mxu0 %v734
    %792 = vmatpush1.bf16.msra.mxu0 %v733
    %793 = vmatprep.subr.bf16.mxu0 %v738
    %794 = vmatpush1.bf16.msra.mxu0 %v737
    %795 = vmatprep.subr.bf16.mxu0 %v742
    %796 = vmatpush1.bf16.msra.mxu0 %v741
    %797 = vmatprep.subr.bf16.mxu0 0
    %798 = vmatpush1.bf16.msra.mxu0 0
    %799 = vmatprep.subr.bf16.mxu0 0
    %800 = vmatpush1.bf16.msra.mxu0 0
    %801 = vmatprep.subr.bf16.mxu0 0
    %802 = vmatpush1.bf16.msra.mxu0 0
    %803 = vmatprep.subr.bf16.mxu0 0
    %804 = vmatpush1.bf16.msra.mxu0 0
    %805 = vmatprep.subr.bf16.mxu0 0
    %806 = vmatpush1.bf16.msra.mxu0 0
    %807 = vmatprep.subr.bf16.mxu0 0
    %808 = vmatpush1.bf16.msra.mxu0 0
    %809 = vmatprep.subr.bf16.mxu0 0
    %810 = vmatpush1.bf16.msra.mxu0 0
    %811 = vmatprep.subr.bf16.mxu0 0
    %812 = vmatpush1.bf16.msra.mxu0 0
    %813 = vmatprep.subr.bf16.mxu0 0
    %814 = vmatpush1.bf16.msra.mxu0 0
    %815 = vmatprep.subr.bf16.mxu0 0
    %816 = vmatpush1.bf16.msra.mxu0 0
    %817 = vmatprep.subr.bf16.mxu0 0
    %818 = vmatpush1.bf16.msra.mxu0 0
    %819 = vmatprep.subr.bf16.mxu0 0
    %820 = vmatpush1.bf16.msra.mxu0 0
    %821 = vmatprep.mubr.bf16.mxu0 0
    %822 = vmatmul.mubr.bf16.gmra.mrb[0].mxu0 %v784
    %v823 = vpop.f32.mrb[0].mxu0
    %v824 = vadd.f32 %v756, %v823
    %v825 = vpop.f32.mrb[0].mxu0
    %v826 = vadd.f32 %v756, %v825
    %v827 = vpop.f32.mrb[0].mxu0
    %v828 = vadd.f32 %v761, %v827
    %v829 = vpop.f32.mrb[0].mxu0
    %v830 = vadd.f32 %v761, %v829
    %831 = vmatprep.mubr.bf16.mxu0 0
    %832 = vmatmul.mubr.bf16.gmra.mrb[0].mxu0 %v787
    %v833 = vpop.f32.mrb[0].mxu0
    %v834 = vadd.f32 %v766, %v833
    %v835 = vpop.f32.mrb[0].mxu0
    %v836 = vadd.f32 %v766, %v835
    %v837 = vpop.f32.mrb[0].mxu0
    %v838 = vadd.f32 %v771, %v837
    %v839 = vpop.f32.mrb[0].mxu0
    %v840 = vadd.f32 %v771, %v839
    %841 = vdwg.mxu0
    %842 = vmatprep.subr.bf16.mxu0 %v732
    %843 = vmatpush1.bf16.msra.mxu0 %v731
    %844 = vmatprep.subr.bf16.mxu0 %v736
    %845 = vmatpush1.bf16.msra.mxu0 %v735
    %846 = vmatprep.subr.bf16.mxu0 %v740
    %847 = vmatpush1.bf16.msra.mxu0 %v739
    %848 = vmatprep.subr.bf16.mxu0 %v744
    %849 = vmatpush1.bf16.msra.mxu0 %v743
    %850 = vmatprep.subr.bf16.mxu0 0
    %851 = vmatpush1.bf16.msra.mxu0 0
    %852 = vmatprep.subr.bf16.mxu0 0
    %853 = vmatpush1.bf16.msra.mxu0 0
    %854 = vmatprep.subr.bf16.mxu0 0
    %855 = vmatpush1.bf16.msra.mxu0 0
    %856 = vmatprep.subr.bf16.mxu0 0
    %857 = vmatpush1.bf16.msra.mxu0 0
    %858 = vmatprep.subr.bf16.mxu0 0
    %859 = vmatpush1.bf16.msra.mxu0 0
    %860 = vmatprep.subr.bf16.mxu0 0
    %861 = vmatpush1.bf16.msra.mxu0 0
    %862 = vmatprep.subr.bf16.mxu0 0
    %863 = vmatpush1.bf16.msra.mxu0 0
    %864 = vmatprep.subr.bf16.mxu0 0
    %865 = vmatpush1.bf16.msra.mxu0 0
    %866 = vmatprep.subr.bf16.mxu0 0
    %867 = vmatpush1.bf16.msra.mxu0 0
    %868 = vmatprep.subr.bf16.mxu0 0
    %869 = vmatpush1.bf16.msra.mxu0 0
    %870 = vmatprep.subr.bf16.mxu0 0
    %871 = vmatpush1.bf16.msra.mxu0 0
    %872 = vmatprep.subr.bf16.mxu0 0
    %873 = vmatpush1.bf16.msra.mxu0 0
    %874 = vmatprep.mubr.bf16.mxu0 0
    %875 = vmatmul.mubr.bf16.gmra.mrb[0].mxu0 %v784
    %v876 = vpop.f32.mrb[0].mxu0
    %v877 = vadd.f32 %v756, %v876
    %v878 = vpop.f32.mrb[0].mxu0
    %v879 = vadd.f32 %v756, %v878
    %v880 = vpop.f32.mrb[0].mxu0
    %v881 = vadd.f32 %v761, %v880
    %v882 = vpop.f32.mrb[0].mxu0
    %v883 = vadd.f32 %v761, %v882
    %884 = vmatprep.mubr.bf16.mxu0 0
    %885 = vmatmul.mubr.bf16.gmra.mrb[0].mxu0 %v787
    %v886 = vpop.f32.mrb[0].mxu0
    %v887 = vadd.f32 %v766, %v886
    %v888 = vpop.f32.mrb[0].mxu0
    %v889 = vadd.f32 %v766, %v888
    %v890 = vpop.f32.mrb[0].mxu0
    %v891 = vadd.f32 %v771, %v890
    %v892 = vpop.f32.mrb[0].mxu0
    %v893 = vadd.f32 %v771, %v892
    %894 = vdwg.mxu0
    %v895 = vxor.u32 %v824, 2147483648
    %v896 = vxor.u32 %v826, 2147483648
    %v897 = vxor.u32 %v877, 2147483648
    %v898 = vxor.u32 %v879, 2147483648
    %v899 = vxor.u32 %v828, 2147483648
    %v900 = vxor.u32 %v830, 2147483648
    %v901 = vxor.u32 %v881, 2147483648
    %v902 = vxor.u32 %v883, 2147483648
    %v903 = vxor.u32 %v834, 2147483648
    %v904 = vxor.u32 %v836, 2147483648
    %v905 = vxor.u32 %v887, 2147483648
    %v906 = vxor.u32 %v889, 2147483648
    %v907 = vxor.u32 %v838, 2147483648
    %v908 = vxor.u32 %v840, 2147483648
    %v909 = vxor.u32 %v891, 2147483648
    %v910 = vxor.u32 %v893, 2147483648
    %v911 = vmul.f32 %v895, 1.442695
    %v912 = vpow.pop %v911
    %v913 = vmul.f32 %v896, 1.442695
    %v914 = vpow.pop %v913
    %v915 = vmul.f32 %v897, 1.442695
    %v916 = vpow.pop %v915
    %v917 = vmul.f32 %v898, 1.442695
    %v918 = vpow.pop %v917
    %v919 = vmul.f32 %v899, 1.442695
    %v920 = vpow.pop %v919
    %v921 = vmul.f32 %v900, 1.442695
    %v922 = vpow.pop %v921
    %v923 = vmul.f32 %v901, 1.442695
    %v924 = vpow.pop %v923
    %v925 = vmul.f32 %v902, 1.442695
    %v926 = vpow.pop %v925
    %v927 = vmul.f32 %v903, 1.442695
    %v928 = vpow.pop %v927
    %v929 = vmul.f32 %v904, 1.442695
    %v930 = vpow.pop %v929
    %v931 = vmul.f32 %v905, 1.442695
    %v932 = vpow.pop %v931
    %v933 = vmul.f32 %v906, 1.442695
    %v934 = vpow.pop %v933
    %v935 = vmul.f32 %v907, 1.442695
    %v936 = vpow.pop %v935
    %v937 = vmul.f32 %v908, 1.442695
    %v938 = vpow.pop %v937
    %v939 = vmul.f32 %v909, 1.442695
    %v940 = vpow.pop %v939
    %v941 = vmul.f32 %v910, 1.442695
    %v942 = vpow.pop %v941
    %v943 = vadd.f32 %v912, 1.0
    %v944 = vadd.f32 %v914, 1.0
    %v945 = vadd.f32 %v916, 1.0
    %v946 = vadd.f32 %v918, 1.0
    %v947 = vadd.f32 %v920, 1.0
    %v948 = vadd.f32 %v922, 1.0
    %v949 = vadd.f32 %v924, 1.0
    %v950 = vadd.f32 %v926, 1.0
    %v951 = vadd.f32 %v928, 1.0
    %v952 = vadd.f32 %v930, 1.0
    %v953 = vadd.f32 %v932, 1.0
    %v954 = vadd.f32 %v934, 1.0
    %v955 = vadd.f32 %v936, 1.0
    %v956 = vadd.f32 %v938, 1.0
    %v957 = vadd.f32 %v940, 1.0
    %v958 = vadd.f32 %v942, 1.0
    %v959 = vrcp.pop %v943
    %v960 = vmul.f32 1.0, %v959
    %v961 = vrcp.pop %v944
    %v962 = vmul.f32 1.0, %v961
    %v963 = vrcp.pop %v945
    %v964 = vmul.f32 1.0, %v963
    %v965 = vrcp.pop %v946
    %v966 = vmul.f32 1.0, %v965
    %v967 = vrcp.pop %v947
    %v968 = vmul.f32 1.0, %v967
    %v969 = vrcp.pop %v948
    %v970 = vmul.f32 1.0, %v969
    %v971 = vrcp.pop %v949
    %v972 = vmul.f32 1.0, %v971
    %v973 = vrcp.pop %v950
    %v974 = vmul.f32 1.0, %v973
    %v975 = vrcp.pop %v951
    %v976 = vmul.f32 1.0, %v975
    %v977 = vrcp.pop %v952
    %v978 = vmul.f32 1.0, %v977
    %v979 = vrcp.pop %v953
    %v980 = vmul.f32 1.0, %v979
    %v981 = vrcp.pop %v954
    %v982 = vmul.f32 1.0, %v981
    %v983 = vrcp.pop %v955
    %v984 = vmul.f32 1.0, %v983
    %v985 = vrcp.pop %v956
    %v986 = vmul.f32 1.0, %v985
    %v987 = vrcp.pop %v957
    %v988 = vmul.f32 1.0, %v987
    %v989 = vrcp.pop %v958
    %v990 = vmul.f32 1.0, %v989
    %991 = vst [vmem:[#allocation2] sm:$0xff] %v960
    %992 = vst [vmem:[#allocation2 + $0x8] sm:$0xff] %v962
    %993 = vst [vmem:[#allocation2 + $0x10] sm:$0xff] %v964
    %994 = vst [vmem:[#allocation2 + $0x18] sm:$0xff] %v966
    %995 = vst [vmem:[#allocation2 + $0x20] sm:$0xff] %v968
    %996 = vst [vmem:[#allocation2 + $0x28] sm:$0xff] %v970
    %997 = vst [vmem:[#allocation2 + $0x30] sm:$0xff] %v972
    %998 = vst [vmem:[#allocation2 + $0x38] sm:$0xff] %v974
    %999 = vst [vmem:[#allocation2 + $0x40] sm:$0xff] %v976
    %1000 = vst [vmem:[#allocation2 + $0x48] sm:$0xff] %v978
    %1001 = vst [vmem:[#allocation2 + $0x50] sm:$0xff] %v980
    %1002 = vst [vmem:[#allocation2 + $0x58] sm:$0xff] %v982
    %1003 = vst [vmem:[#allocation2 + $0x60] sm:$0xff] %v984
    %1004 = vst [vmem:[#allocation2 + $0x68] sm:$0xff] %v986
    %1005 = vst [vmem:[#allocation2 + $0x70] sm:$0xff] %v988
    %1006 = vst [vmem:[#allocation2 + $0x78] sm:$0xff] %v990
    // Predicated region
    $region38: #{tpu_custom_call.1} parent=1 // pred_check
      _
    $region39: #{tpu_custom_call.1} parent=1 // pred_check_branch
      %1008 = sbr.rel (0) target = $region41
    $region40: #{tpu_custom_call.1} parent=1 // pred_region
      %s1010 = ssub.s32 2048, 2048
      %1011 = vsyncadd [#allocation3], %s1010
      %s1012 = sshll.u32 [#allocation2], 4
      %s1013 = int_to_ptr.vmem [resolvable:$true] %s1012
      %1018 = dma.vmem_to_hbm [thread:$0]  %s1013, 2048, %s9, [#allocation3], 512, 512, 32
    $region41: #{tpu_custom_call.1} parent=1 // pred_fallthru
      _
    // Predicated region
    $region42: #{tpu_custom_call.1} parent=1 // pred_check
      _
    $region43: #{tpu_custom_call.1} parent=1 // pred_check_branch
      %1020 = sbr.rel (0) target = $region45
    $region44: #{tpu_custom_call.1} parent=1 // pred_region
      %1021 = dma.done [#allocation3], 2048
    $region45: #{tpu_custom_call.1} parent=1 // pred_fallthru
      _
    %1022 = vsyncpa [#allocation3], 1

</llo_original>
